<compile_context>
chip_gen: v7x
topology: tpu7x:2x2x1
jax: 0.10.0
libtpu: 0.0.40
codegen_flags: <defaults>
</compile_context>

<pallas_src>
import functools

import jax
import jax.numpy as jnp
from jax import lax
from jax.experimental import pallas as pl
from jax.experimental.pallas import tpu as pltpu

NEG_BIG = -1e30       # "minus infinity" for masked softmax lanes


def _round_up(x, m):
    return ((x + m - 1) // m) * m


def _linker_heads_kernel(
    x_ref,                       # (tr, H)        f32/bf16 (cast to bf16 in-kernel)
    w1_ref, b1_ref,              # (H, 512) bf16, (1, 512) f32   [w1m | w1e]
    w2m_ref, b2m_ref,            # (256, 256) bf16, (1, 256) f32
    w4m_ref, b4m_ref,            # (256, MD_PAD) bf16 (padded), (1, MD_PAD) f32
    w2e_ref, b2e_ref,            # (256, 256) bf16, (1, 256) f32
    w4e_ref, b4e_ref,            # (256, E_pad) bf16 (padded), (1, E_pad) f32
    md_ref,                      # (md_sub, tr)  f32  (transposed: classes on sublanes)
    ed_ref,                      # (tr, E_pad)   f32 or bf16
    *, n_md, md_sub,
):
    # f32 -> bf16 cast happens here (no separate wrapper pass over x).
    x = x_ref[...].astype(jnp.bfloat16)

    # ---- fused first layer: one wide matmul for both heads --------------
    h1 = jnp.dot(x, w1_ref[...], preferred_element_type=jnp.float32)
    h1 = jnp.maximum(h1 + b1_ref[...], 0.0)                   # relu(linear1)
    hm = h1[:, :256].astype(jnp.bfloat16)                     # MD branch
    he = h1[:, 256:].astype(jnp.bfloat16)                     # ED branch

    # ---------------- MentionDetectionHead -------------------------------
    h = jnp.dot(hm, w2m_ref[...], preferred_element_type=jnp.float32)
    h = jnp.maximum(h + b2m_ref[...], 0.0).astype(jnp.bfloat16)   # relu(linear2)
    logits = jnp.dot(h, w4m_ref[...], preferred_element_type=jnp.float32)
    logits = jnp.maximum(logits + b4m_ref[...], 0.0)          # relu(linear4)
    # log-softmax over the n_md valid class lanes (lanes n_md.. are padding)
    lane = lax.broadcasted_iota(jnp.int32, logits.shape, dimension=1)
    valid = lane < n_md
    masked = jnp.where(valid, logits, jnp.float32(NEG_BIG))
    m = jnp.max(masked, axis=-1, keepdims=True)
    z = masked - m
    p = jnp.where(valid, jnp.exp(z), jnp.float32(0.0))
    lse = jnp.log(jnp.sum(p, axis=-1, keepdims=True))
    md = z - lse                                              # (tr, MD_PAD) f32
    # Transposed, lane-dense store: classes on sublanes, rows on lanes.
    md_t = jnp.transpose(md)                                  # (MD_PAD, tr)
    md_ref[...] = md_t[:md_sub, :].astype(md_ref.dtype)

    # -------------- EntityDisambiguationHead -----------------------------
    e = jnp.dot(he, w2e_ref[...], preferred_element_type=jnp.float32)
    e = jnp.maximum(e + b2e_ref[...], 0.0).astype(jnp.bfloat16)   # relu(linear2)
    e = jnp.dot(e, w4e_ref[...], preferred_element_type=jnp.float32)
    ed_ref[...] = jnp.tanh(e + b4e_ref[...]).astype(ed_ref.dtype)  # tanh(linear4)


def entity_linker_heads(hidden_states, params, *, tile_rows=1024,
                        ed_out_dtype=jnp.float32):
    """hidden_states: [B, S, H].  Returns (md [B,S,n_md], ed [B,S,E])."""
    B, S, H = hidden_states.shape
    rows = B * S

    (w1m, b1m, w2m, b2m, w4m, b4m,
     w1e, b1e, w2e, b2e, w4e, b4e) = params
    n_md = w4m.shape[1]
    E = w4e.shape[1]
    E_pad = _round_up(E, 128)
    MD_PAD = _round_up(max(n_md, 128), 128)
    md_sub = _round_up(n_md, 8)           # sublane rows of the transposed MD slab

    # -- row tiling --------------------------------------------------------
    # tr is a multiple of 128 (lane dim of the transposed MD output) and is
    # capped at ceil(rows/2) so the grid has >= 2 steps whenever possible
    # (keeps both TensorCores busy on v7x).  Tiny inputs use a single tile
    # whose blocks equal the full (padded) array dims.
    rows8 = _round_up(rows, 8)
    tile_rows = max(128, _round_up(tile_rows, 128))
    if rows8 <= 128:
        tr = rows8
    else:
        tr = min(tile_rows, _round_up(pl.cdiv(rows8, 2), 128))
    rows_p = _round_up(rows8, tr)
    grid = (rows_p // tr,)

    x = hidden_states.reshape(rows, H)            # keep native dtype (f32/bf16)
    if rows_p != rows:
        x = jnp.pad(x, ((0, rows_p - rows), (0, 0)))

    # -- pack / pad / cast parameters (weights bf16, biases f32) -----------
    bf = lambda a: a.astype(jnp.bfloat16)
    f32 = lambda a: a.astype(jnp.float32)
    w1_cat = bf(jnp.concatenate([w1m, w1e], axis=1))            # (H, 512)
    b1_cat = f32(jnp.concatenate([b1m, b1e], axis=1))           # (1, 512)
    w2m_b, b2m_b = bf(w2m), f32(b2m)
    w2e_b, b2e_b = bf(w2e), f32(b2e)
    w4m_p = bf(jnp.pad(w4m, ((0, 0), (0, MD_PAD - n_md))))
    b4m_p = f32(jnp.pad(b4m, ((0, 0), (0, MD_PAD - n_md))))
    w4e_p = bf(jnp.pad(w4e, ((0, 0), (0, E_pad - E))))
    b4e_p = f32(jnp.pad(b4e, ((0, 0), (0, E_pad - E))))

    weights = (w1_cat, b1_cat, w2m_b, b2m_b, w4m_p, b4m_p,
               w2e_b, b2e_b, w4e_p, b4e_p)

    def resident_spec(arr):
        # Constant index_map + single buffer: fetched once, stays in VMEM for
        # the whole grid (no second buffer needed).
        return pl.BlockSpec(arr.shape, lambda i: (0, 0),
                            pipeline_mode=pl.Buffered(1))

    # -- VMEM budget / limit -----------------------------------------------
    x_bytes = 2 * tr * H * x.dtype.itemsize                      # double-buffered
    w_bytes = sum(a.size * a.dtype.itemsize for a in weights)    # single-buffered
    out_bytes = 2 * (md_sub * tr * 4
                     + tr * E_pad * jnp.dtype(ed_out_dtype).itemsize)
    vmem_need = x_bytes + w_bytes + out_bytes
    try:
        phys_vmem = getattr(pltpu.get_tpu_info(), "vmem_capacity_bytes", 64 << 20)
    except Exception:  # pragma: no cover - conservative fallback
        phys_vmem = 64 << 20
    vmem_limit = int(min(max(2 * vmem_need, 32 << 20), (phys_vmem * 3) // 4))

    flops = 2 * rows_p * (H * 512 + 2 * 256 * 256 + 256 * (MD_PAD + E_pad))
    bytes_accessed = (
        rows_p * H * x.dtype.itemsize                 # streamed x
        + w_bytes                                     # resident weights/biases
        + rows_p * md_sub * 4                         # transposed MD slab
        + rows_p * E_pad * jnp.dtype(ed_out_dtype).itemsize
    )
    cost = pl.CostEstimate(
        flops=flops,
        transcendentals=rows_p * (MD_PAD + 1 + E_pad),   # exp + log + tanh
        bytes_accessed=bytes_accessed,
    )

    kernel = functools.partial(_linker_heads_kernel, n_md=n_md, md_sub=md_sub)

    md_t, ed_flat = pl.pallas_call(
        kernel,
        out_shape=(
            jax.ShapeDtypeStruct((md_sub, rows_p), jnp.float32),
            jax.ShapeDtypeStruct((rows_p, E_pad), ed_out_dtype),
        ),
        grid_spec=pltpu.PrefetchScalarGridSpec(
            num_scalar_prefetch=0,
            grid=grid,
            in_specs=[
                # TODO(synk): bump to pipeline_mode=pl.Buffered(3) if an xprof
                # trace shows exposed per-step input DMA on v6e.
                pl.BlockSpec((tr, H), lambda i: (i, 0)),
            ] + [resident_spec(a) for a in weights],
            out_specs=[
                pl.BlockSpec((md_sub, tr), lambda i: (0, i)),
                pl.BlockSpec((tr, E_pad), lambda i: (i, 0)),
            ],
        ),
        compiler_params=pltpu.CompilerParams(
            dimension_semantics=("parallel",),
            vmem_limit_bytes=vmem_limit,
        ),
        cost_estimate=cost,
    )(x, *weights)

    md = jnp.transpose(md_t[:n_md, :rows]).reshape(B, S, n_md)
    ed = ed_flat[:rows, :E].reshape(B, S, E)
    return md, ed


def init_params(key, hidden_dim, entity_embed_dim):
    """Deterministic synthetic parameters matching the nn.Linear shapes.

    Weights stored as [in, out] (transposed vs. torch's [out, in]) so the
    kernel does x @ W + b.  Biases are 2-D [1, out] for TPU layout.
    """
    ks = jax.random.split(key, 12)
    s = 0.05

    def w(k, i, o):
        return jax.random.normal(k, (i, o), jnp.float32) * s

    def b(k, o):
        return jax.random.normal(k, (1, o), jnp.float32) * s

    # MentionDetectionHead: H->256, 256->256, 256->3
    w1m, b1m = w(ks[0], hidden_dim, 256), b(ks[1], 256)
    w2m, b2m = w(ks[2], 256, 256),        b(ks[3], 256)
    w4m, b4m = w(ks[4], 256, 3),          b(ks[5], 3)
    # EntityDisambiguationHead: H->256, 256->256, 256->E
    w1e, b1e = w(ks[6], hidden_dim, 256), b(ks[7], 256)
    w2e, b2e = w(ks[8], 256, 256),        b(ks[9], 256)
    w4e, b4e = w(ks[10], 256, entity_embed_dim), b(ks[11], entity_embed_dim)

    return (w1m, b1m, w2m, b2m, w4m, b4m,
            w1e, b1e, w2e, b2e, w4e, b4e)


def reference(hidden_states, params):
    """Pure-JAX reference mirroring the kernel's bf16 matmul inputs / f32 acc."""
    (w1m, b1m, w2m, b2m, w4m, b4m,
     w1e, b1e, w2e, b2e, w4e, b4e) = params
    B, S, H = hidden_states.shape
    n_md = w4m.shape[1]
    bf = lambda a: a.astype(jnp.bfloat16)

    def dot(a, w):
        return jnp.dot(bf(a), bf(w), preferred_element_type=jnp.float32)

    x = hidden_states.reshape(B * S, H)
    h = jnp.maximum(dot(x, w1m) + b1m, 0.0)
    h = jnp.maximum(dot(h, w2m) + b2m, 0.0)
    logits = jnp.maximum(dot(h, w4m) + b4m, 0.0)
    md = jax.nn.log_softmax(logits, axis=-1)

    e = jnp.maximum(dot(x, w1e) + b1e, 0.0)
    e = jnp.maximum(dot(e, w2e) + b2e, 0.0)
    ed = jnp.tanh(dot(e, w4e) + b4e)
    return md.reshape(B, S, n_md), ed.reshape(B, S, -1)


if __name__ == "__main__":
    B, S, H = 2, 8, 32          # batch, seq, BERT hidden size (small synthetic)
    E = 64                      # entity embedding dim

    key = jax.random.PRNGKey(0)
    k_x, k_p = jax.random.split(key)
    hidden_states = jax.random.normal(k_x, (B, S, H), jnp.float32)
    params = init_params(k_p, H, E)

    md_out, ed_out = entity_linker_heads(hidden_states, params)
    md_out = jax.block_until_ready(md_out)
    ed_out = jax.block_until_ready(ed_out)

    md_ref, ed_ref = reference(hidden_states, params)
    assert md_out.shape == (B, S, 3) and ed_out.shape == (B, S, E)
    assert jnp.allclose(md_out, md_ref, atol=1e-3, rtol=1e-3), float(
        jnp.max(jnp.abs(md_out - md_ref)))
    assert jnp.allclose(ed_out, ed_ref, atol=1e-3, rtol=1e-3), float(
        jnp.max(jnp.abs(ed_out - ed_ref)))

    print("KERNEL_OK")
</pallas_src>

<mosaic_0001>
module attributes {stable_mosaic.version = 11 : i64} {
  func.func @_linker_heads_kernel(%arg0: i32, %arg1: memref<16x32xf32, #tpu.memory_space<vmem>>, %arg2: memref<32x512xbf16, #tpu.memory_space<vmem>>, %arg3: memref<1x512xf32, #tpu.memory_space<vmem>>, %arg4: memref<256x256xbf16, #tpu.memory_space<vmem>>, %arg5: memref<1x256xf32, #tpu.memory_space<vmem>>, %arg6: memref<256x128xbf16, #tpu.memory_space<vmem>>, %arg7: memref<1x128xf32, #tpu.memory_space<vmem>>, %arg8: memref<256x256xbf16, #tpu.memory_space<vmem>>, %arg9: memref<1x256xf32, #tpu.memory_space<vmem>>, %arg10: memref<256x128xbf16, #tpu.memory_space<vmem>>, %arg11: memref<1x128xf32, #tpu.memory_space<vmem>>, %arg12: memref<8x16xf32, #tpu.memory_space<vmem>>, %arg13: memref<16x128xf32, #tpu.memory_space<vmem>>) attributes {dimension_semantics = [#tpu.dimension_semantics<parallel>], iteration_bounds = array<i64: 1>, scalar_prefetch = 0 : i64, scratch_operands = 0 : i64, tpu.core_type = #tpu.core_type<tc>, window_params = [{transform_indices = @transform_0, window_bounds = array<i64: 16, 32>}, {pipeline_mode = #tpu.pipeline_mode<synchronous>, transform_indices = @transform_1, window_bounds = array<i64: 32, 512>}, {pipeline_mode = #tpu.pipeline_mode<synchronous>, transform_indices = @transform_2, window_bounds = array<i64: 1, 512>}, {pipeline_mode = #tpu.pipeline_mode<synchronous>, transform_indices = @transform_3, window_bounds = array<i64: 256, 256>}, {pipeline_mode = #tpu.pipeline_mode<synchronous>, transform_indices = @transform_4, window_bounds = array<i64: 1, 256>}, {pipeline_mode = #tpu.pipeline_mode<synchronous>, transform_indices = @transform_5, window_bounds = array<i64: 256, 128>}, {pipeline_mode = #tpu.pipeline_mode<synchronous>, transform_indices = @transform_6, window_bounds = array<i64: 1, 128>}, {pipeline_mode = #tpu.pipeline_mode<synchronous>, transform_indices = @transform_7, window_bounds = array<i64: 256, 256>}, {pipeline_mode = #tpu.pipeline_mode<synchronous>, transform_indices = @transform_8, window_bounds = array<i64: 1, 256>}, {pipeline_mode = #tpu.pipeline_mode<synchronous>, transform_indices = @transform_9, window_bounds = array<i64: 256, 128>}, {pipeline_mode = #tpu.pipeline_mode<synchronous>, transform_indices = @transform_10, window_bounds = array<i64: 1, 128>}, {transform_indices = @transform_11, window_bounds = array<i64: 8, 16>}, {transform_indices = @transform_12, window_bounds = array<i64: 16, 128>}]} {
    %c0 = arith.constant 0 : index
    %c0_0 = arith.constant 0 : index
    %0 = vector.load %arg1[%c0, %c0_0] : memref<16x32xf32, #tpu.memory_space<vmem>>, vector<16x32xf32>
    %1 = arith.truncf %0 : vector<16x32xf32> to vector<16x32xbf16>
    %c0_1 = arith.constant 0 : index
    %c0_2 = arith.constant 0 : index
    %2 = vector.load %arg2[%c0_1, %c0_2] : memref<32x512xbf16, #tpu.memory_space<vmem>>, vector<32x512xbf16>
    %cst = arith.constant dense<0.000000e+00> : vector<16x512xf32>
    %3 = tpu.matmul %1, %2, %cst {dimension_numbers = #tpu.dot_dimension_numbers<[1], [0], [0], [1], [0, 0, 1, 1], [], []>} : vector<16x32xbf16>, vector<32x512xbf16>, vector<16x512xf32> -> vector<16x512xf32>
    %c0_3 = arith.constant 0 : index
    %c0_4 = arith.constant 0 : index
    %4 = vector.load %arg3[%c0_3, %c0_4] : memref<1x512xf32, #tpu.memory_space<vmem>>, vector<1x512xf32>
    %5 = vector.broadcast %4 : vector<1x512xf32> to vector<16x512xf32>
    %6 = arith.addf %3, %5 : vector<16x512xf32>
    %cst_5 = arith.constant 0.000000e+00 : f32
    %7 = vector.broadcast %cst_5 : f32 to vector<16x512xf32>
    %8 = arith.maximumf %6, %7 : vector<16x512xf32>
    %9 = vector.extract_strided_slice %8 {offsets = [0, 0], sizes = [16, 256], strides = [1, 1]} : vector<16x512xf32> to vector<16x256xf32>
    %10 = arith.truncf %9 : vector<16x256xf32> to vector<16x256xbf16>
    %11 = vector.extract_strided_slice %8 {offsets = [0, 256], sizes = [16, 256], strides = [1, 1]} : vector<16x512xf32> to vector<16x256xf32>
    %12 = arith.truncf %11 : vector<16x256xf32> to vector<16x256xbf16>
    %c0_6 = arith.constant 0 : index
    %c0_7 = arith.constant 0 : index
    %13 = vector.load %arg4[%c0_6, %c0_7] : memref<256x256xbf16, #tpu.memory_space<vmem>>, vector<256x256xbf16>
    %cst_8 = arith.constant dense<0.000000e+00> : vector<16x256xf32>
    %14 = tpu.matmul %10, %13, %cst_8 {dimension_numbers = #tpu.dot_dimension_numbers<[1], [0], [0], [1], [0, 0, 1, 1], [], []>} : vector<16x256xbf16>, vector<256x256xbf16>, vector<16x256xf32> -> vector<16x256xf32>
    %c0_9 = arith.constant 0 : index
    %c0_10 = arith.constant 0 : index
    %15 = vector.load %arg5[%c0_9, %c0_10] : memref<1x256xf32, #tpu.memory_space<vmem>>, vector<1x256xf32>
    %16 = vector.broadcast %15 : vector<1x256xf32> to vector<16x256xf32>
    %17 = arith.addf %14, %16 : vector<16x256xf32>
    %cst_11 = arith.constant 0.000000e+00 : f32
    %18 = vector.broadcast %cst_11 : f32 to vector<16x256xf32>
    %19 = arith.maximumf %17, %18 : vector<16x256xf32>
    %20 = arith.truncf %19 : vector<16x256xf32> to vector<16x256xbf16>
    %c0_12 = arith.constant 0 : index
    %c0_13 = arith.constant 0 : index
    %21 = vector.load %arg6[%c0_12, %c0_13] : memref<256x128xbf16, #tpu.memory_space<vmem>>, vector<256x128xbf16>
    %cst_14 = arith.constant dense<0.000000e+00> : vector<16x128xf32>
    %22 = tpu.matmul %20, %21, %cst_14 {dimension_numbers = #tpu.dot_dimension_numbers<[1], [0], [0], [1], [0, 0, 1, 1], [], []>} : vector<16x256xbf16>, vector<256x128xbf16>, vector<16x128xf32> -> vector<16x128xf32>
    %c0_15 = arith.constant 0 : index
    %c0_16 = arith.constant 0 : index
    %23 = vector.load %arg7[%c0_15, %c0_16] : memref<1x128xf32, #tpu.memory_space<vmem>>, vector<1x128xf32>
    %24 = vector.broadcast %23 : vector<1x128xf32> to vector<16x128xf32>
    %25 = arith.addf %22, %24 : vector<16x128xf32>
    %cst_17 = arith.constant 0.000000e+00 : f32
    %26 = vector.broadcast %cst_17 : f32 to vector<16x128xf32>
    %27 = arith.maximumf %25, %26 : vector<16x128xf32>
    %28 = tpu.iota {dimensions = array<i32: 1>} : vector<16x128xi32>
    %c3_i32 = arith.constant 3 : i32
    %29 = vector.broadcast %c3_i32 : i32 to vector<16x128xi32>
    %30 = arith.cmpi slt, %28, %29 : vector<16x128xi32>
    %cst_18 = arith.constant -1.000000e+30 : f32
    %31 = vector.broadcast %cst_18 : f32 to vector<16x128xf32>
    %32 = arith.select %30, %27, %31 : vector<16x128xi1>, vector<16x128xf32>
    %cst_19 = arith.constant dense<0xFF800000> : vector<16xf32>
    %33 = vector.multi_reduction <maximumf>, %32, %cst_19 [1] : vector<16x128xf32> to vector<16xf32>
    %34 = vector.shape_cast %33 : vector<16xf32> to vector<16x1xf32>
    %35 = vector.broadcast %34 : vector<16x1xf32> to vector<16x128xf32>
    %36 = arith.subf %32, %35 : vector<16x128xf32>
    %37 = math.exp %36 : vector<16x128xf32>
    %cst_20 = arith.constant 0.000000e+00 : f32
    %38 = vector.broadcast %cst_20 : f32 to vector<16x128xf32>
    %39 = arith.select %30, %37, %38 : vector<16x128xi1>, vector<16x128xf32>
    %cst_21 = arith.constant dense<0.000000e+00> : vector<16xf32>
    %40 = vector.multi_reduction <add>, %39, %cst_21 [1] : vector<16x128xf32> to vector<16xf32>
    %41 = vector.shape_cast %40 : vector<16xf32> to vector<16x1xf32>
    %42 = math.log %41 : vector<16x1xf32>
    %43 = vector.broadcast %42 : vector<16x1xf32> to vector<16x128xf32>
    %44 = arith.subf %36, %43 : vector<16x128xf32>
    %45 = tpu.transpose %44, [1, 0] : vector<16x128xf32> -> vector<128x16xf32>
    %46 = vector.extract_strided_slice %45 {offsets = [0, 0], sizes = [8, 16], strides = [1, 1]} : vector<128x16xf32> to vector<8x16xf32>
    %c0_22 = arith.constant 0 : index
    %c0_23 = arith.constant 0 : index
    %47 = vector.load %arg12[%c0_22, %c0_23] : memref<8x16xf32, #tpu.memory_space<vmem>>, vector<8x16xf32>
    tpu.vector_store %arg12[%c0_22, %c0_23], %46 {strides = array<i32>} : memref<8x16xf32, #tpu.memory_space<vmem>>, vector<8x16xf32>,
    %c0_24 = arith.constant 0 : index
    %c0_25 = arith.constant 0 : index
    %48 = vector.load %arg8[%c0_24, %c0_25] : memref<256x256xbf16, #tpu.memory_space<vmem>>, vector<256x256xbf16>
    %cst_26 = arith.constant dense<0.000000e+00> : vector<16x256xf32>
    %49 = tpu.matmul %12, %48, %cst_26 {dimension_numbers = #tpu.dot_dimension_numbers<[1], [0], [0], [1], [0, 0, 1, 1], [], []>} : vector<16x256xbf16>, vector<256x256xbf16>, vector<16x256xf32> -> vector<16x256xf32>
    %c0_27 = arith.constant 0 : index
    %c0_28 = arith.constant 0 : index
    %50 = vector.load %arg9[%c0_27, %c0_28] : memref<1x256xf32, #tpu.memory_space<vmem>>, vector<1x256xf32>
    %51 = vector.broadcast %50 : vector<1x256xf32> to vector<16x256xf32>
    %52 = arith.addf %49, %51 : vector<16x256xf32>
    %cst_29 = arith.constant 0.000000e+00 : f32
    %53 = vector.broadcast %cst_29 : f32 to vector<16x256xf32>
    %54 = arith.maximumf %52, %53 : vector<16x256xf32>
    %55 = arith.truncf %54 : vector<16x256xf32> to vector<16x256xbf16>
    %c0_30 = arith.constant 0 : index
    %c0_31 = arith.constant 0 : index
    %56 = vector.load %arg10[%c0_30, %c0_31] : memref<256x128xbf16, #tpu.memory_space<vmem>>, vector<256x128xbf16>
    %cst_32 = arith.constant dense<0.000000e+00> : vector<16x128xf32>
    %57 = tpu.matmul %55, %56, %cst_32 {dimension_numbers = #tpu.dot_dimension_numbers<[1], [0], [0], [1], [0, 0, 1, 1], [], []>} : vector<16x256xbf16>, vector<256x128xbf16>, vector<16x128xf32> -> vector<16x128xf32>
    %c0_33 = arith.constant 0 : index
    %c0_34 = arith.constant 0 : index
    %58 = vector.load %arg11[%c0_33, %c0_34] : memref<1x128xf32, #tpu.memory_space<vmem>>, vector<1x128xf32>
    %59 = vector.broadcast %58 : vector<1x128xf32> to vector<16x128xf32>
    %60 = arith.addf %57, %59 : vector<16x128xf32>
    %61 = math.tanh %60 : vector<16x128xf32>
    %c0_35 = arith.constant 0 : index
    %c0_36 = arith.constant 0 : index
    %62 = vector.load %arg13[%c0_35, %c0_36] : memref<16x128xf32, #tpu.memory_space<vmem>>, vector<16x128xf32>
    tpu.vector_store %arg13[%c0_35, %c0_36], %61 {strides = array<i32>} : memref<16x128xf32, #tpu.memory_space<vmem>>, vector<16x128xf32>,
    return
  }
  func.func @transform_0(%arg0: i32) -> (i32, i32) {
    %c0_i32 = arith.constant 0 : i32
    %c0_i32_0 = arith.constant 0 : i32
    return %arg0, %c0_i32 : i32, i32
  }
  func.func @transform_1(%arg0: i32) -> (i32, i32) {
    %c0_i32 = arith.constant 0 : i32
    %c0_i32_0 = arith.constant 0 : i32
    %c0_i32_1 = arith.constant 0 : i32
    return %c0_i32, %c0_i32_0 : i32, i32
  }
  func.func @transform_2(%arg0: i32) -> (i32, i32) {
    %c0_i32 = arith.constant 0 : i32
    %c0_i32_0 = arith.constant 0 : i32
    %c0_i32_1 = arith.constant 0 : i32
    return %c0_i32, %c0_i32_0 : i32, i32
  }
  func.func @transform_3(%arg0: i32) -> (i32, i32) {
    %c0_i32 = arith.constant 0 : i32
    %c0_i32_0 = arith.constant 0 : i32
    %c0_i32_1 = arith.constant 0 : i32
    return %c0_i32, %c0_i32_0 : i32, i32
  }
  func.func @transform_4(%arg0: i32) -> (i32, i32) {
    %c0_i32 = arith.constant 0 : i32
    %c0_i32_0 = arith.constant 0 : i32
    %c0_i32_1 = arith.constant 0 : i32
    return %c0_i32, %c0_i32_0 : i32, i32
  }
  func.func @transform_5(%arg0: i32) -> (i32, i32) {
    %c0_i32 = arith.constant 0 : i32
    %c0_i32_0 = arith.constant 0 : i32
    %c0_i32_1 = arith.constant 0 : i32
    return %c0_i32, %c0_i32_0 : i32, i32
  }
  func.func @transform_6(%arg0: i32) -> (i32, i32) {
    %c0_i32 = arith.constant 0 : i32
    %c0_i32_0 = arith.constant 0 : i32
    %c0_i32_1 = arith.constant 0 : i32
    return %c0_i32, %c0_i32_0 : i32, i32
  }
  func.func @transform_7(%arg0: i32) -> (i32, i32) {
    %c0_i32 = arith.constant 0 : i32
    %c0_i32_0 = arith.constant 0 : i32
    %c0_i32_1 = arith.constant 0 : i32
    return %c0_i32, %c0_i32_0 : i32, i32
  }
  func.func @transform_8(%arg0: i32) -> (i32, i32) {
    %c0_i32 = arith.constant 0 : i32
    %c0_i32_0 = arith.constant 0 : i32
    %c0_i32_1 = arith.constant 0 : i32
    return %c0_i32, %c0_i32_0 : i32, i32
  }
  func.func @transform_9(%arg0: i32) -> (i32, i32) {
    %c0_i32 = arith.constant 0 : i32
    %c0_i32_0 = arith.constant 0 : i32
    %c0_i32_1 = arith.constant 0 : i32
    return %c0_i32, %c0_i32_0 : i32, i32
  }
  func.func @transform_10(%arg0: i32) -> (i32, i32) {
    %c0_i32 = arith.constant 0 : i32
    %c0_i32_0 = arith.constant 0 : i32
    %c0_i32_1 = arith.constant 0 : i32
    return %c0_i32, %c0_i32_0 : i32, i32
  }
  func.func @transform_11(%arg0: i32) -> (i32, i32) {
    %c0_i32 = arith.constant 0 : i32
    %c0_i32_0 = arith.constant 0 : i32
    return %c0_i32, %arg0 : i32, i32
  }
  func.func @transform_12(%arg0: i32) -> (i32, i32) {
    %c0_i32 = arith.constant 0 : i32
    %c0_i32_0 = arith.constant 0 : i32
    return %arg0, %c0_i32 : i32, i32
  }
}

</mosaic_0001>

<llo_original>
// kernel: tpu_custom_call.1
$region0: #{tpu_custom_call.1}
  #allocation0 [shape = 'u32[]', space=smem, size = 0x4, offset = 0x4, fixed_abs, tag = 'smem constant byte address 0x4 - core index']
  #allocation1 [shape = 'u32[144,128]{1,0:T(1,128)}', space=vmem, size = 0x12000, scoped, tag = 'internal scratch']
  %s0 = inlined_call_operand.hbm [shape: f32[16,32], index: 0, kind: input, shape index: {}]
  %s1 = inlined_call_operand.hbm [shape: bf16[32,512], index: 1, kind: input, shape index: {}]
  %s2 = inlined_call_operand.vmem [shape: f32[1,512], index: 2, kind: input, shape index: {}]
  %s3 = inlined_call_operand.hbm [shape: bf16[256,256], index: 3, kind: input, shape index: {}]
  %s4 = inlined_call_operand.vmem [shape: f32[1,256], index: 4, kind: input, shape index: {}]
  %s5 = inlined_call_operand.hbm [shape: bf16[256,128], index: 5, kind: input, shape index: {}]
  %s6 = inlined_call_operand.vmem [shape: f32[1,128], index: 6, kind: input, shape index: {}]
  %s7 = inlined_call_operand.hbm [shape: bf16[256,256], index: 7, kind: input, shape index: {}]
  %s8 = inlined_call_operand.vmem [shape: f32[1,256], index: 8, kind: input, shape index: {}]
  %s9 = inlined_call_operand.hbm [shape: bf16[256,128], index: 9, kind: input, shape index: {}]
  %s10 = inlined_call_operand.vmem [shape: f32[1,128], index: 10, kind: input, shape index: {}]
  %s11 = inlined_call_operand.hbm [shape: f32[8,16], index: 11, kind: output, shape index: {0}]
  %s12 = inlined_call_operand.hbm [shape: f32[16,128], index: 12, kind: output, shape index: {1}]
  %13 = xla_tuple %s11, %s12
  %s14 = sld [smem:[#allocation0]]
  $region86: #{tpu_custom_call.1} parent=0
    _
  %s16 = ssub.s32 1, %s14
  %s17 = scalar_select 0, %s16, %s14
  $region1: #{tpu_custom_call.1} parent=0
    #allocation2 [shape = 'u8[8192]{0}', space=vmem, size = 0x2000, scoped, tag = 'input window, operand 0, single buffered']
    #allocation3 [shape = 's32[1]{0}', space=sflag, size = 0x4, scoped, tag = 'scoped memory for tpu_custom_call.1']
    #allocation4 [shape = 's32[1]{0}', space=sflag, size = 0x4, scoped, tag = 'scoped memory for tpu_custom_call.1']
    #allocation5 [shape = 'u8[32768]{0}', space=vmem, size = 0x8000, scoped, tag = 'input window, operand 1, single buffered']
    #allocation6 [shape = 's32[1]{0}', space=sflag, size = 0x4, scoped, tag = 'scoped memory for tpu_custom_call.1']
    #allocation7 [shape = 'u8[131072]{0}', space=vmem, size = 0x20000, scoped, tag = 'input window, operand 3, single buffered']
    #allocation8 [shape = 'u8[65536]{0}', space=vmem, size = 0x10000, scoped, tag = 'input window, operand 5, single buffered']
    #allocation9 [shape = 's32[1]{0}', space=sflag, size = 0x4, scoped, tag = 'scoped memory for tpu_custom_call.1']
    #allocation10 [shape = 'u8[131072]{0}', space=vmem, size = 0x20000, scoped, tag = 'input window, operand 7, single buffered']
    #allocation11 [shape = 'u8[65536]{0}', space=vmem, size = 0x10000, scoped, tag = 'input window, operand 9, single buffered']
    #allocation12 [shape = 's32[1]{0}', space=sflag, size = 0x4, scoped, tag = 'scoped memory for tpu_custom_call.1']
    #allocation13 [shape = 'u8[4096]{0}', space=vmem, size = 0x1000, scoped, tag = 'output window, operand 0, single buffered']
    #allocation14 [shape = 'u8[8192]{0}', space=vmem, size = 0x2000, scoped, tag = 'output window, operand 1, single buffered']
    #allocation15 [shape = 's32[1]{0}', space=sflag, size = 0x4, scoped, tag = 'scoped memory for tpu_custom_call.1']
    %18 = vsyncpa [#allocation3], 0
    %19 = vsyncpa [#allocation6], 0
    %20 = vsyncpa [#allocation9], 0
    %21 = vsyncpa [#allocation12], 0
    %22 = vsyncpa [#allocation4], 0
    %23 = vsyncpa [#allocation15], 0
    // Predicated region
    $region2: #{tpu_custom_call.1} parent=1 // pred_check
      _
    $region3: #{tpu_custom_call.1} parent=1 // pred_check_branch
      %25 = sbr.rel (0) target = $region5
    $region4: #{tpu_custom_call.1} parent=1 // pred_region
      %s27 = ssub.s32 256, 256
      %28 = vsyncadd [#allocation3], %s27
      %s29 = sshll.u32 [#allocation2], 4
      %s30 = int_to_ptr.vmem [resolvable:$true] %s29
      %35 = dma.hbm_to_vmem [thread:$0]  %s0, 256, %s30, [#allocation3], 128, 128, 8
    $region5: #{tpu_custom_call.1} parent=1 // pred_fallthru
      _
    // Predicated region
    $region6: #{tpu_custom_call.1} parent=1 // pred_check
      _
    $region7: #{tpu_custom_call.1} parent=1 // pred_check_branch
      %37 = sbr.rel (0) target = $region9
    $region8: #{tpu_custom_call.1} parent=1 // pred_region
      %s39 = ssub.s32 1024, 1024
      %40 = vsyncadd [#allocation6], %s39
      %s41 = sshll.u32 [#allocation5], 4
      %s42 = int_to_ptr.vmem [resolvable:$true] %s41
      %47 = dma.hbm_to_vmem [thread:$0]  %s1, 1024, %s42, [#allocation6], 256, 256, 16
    $region9: #{tpu_custom_call.1} parent=1 // pred_fallthru
      _
    // Predicated region
    $region10: #{tpu_custom_call.1} parent=1 // pred_check
      _
    $region11: #{tpu_custom_call.1} parent=1 // pred_check_branch
      %49 = sbr.rel (0) target = $region13
    $region12: #{tpu_custom_call.1} parent=1 // pred_region
      _
    $region13: #{tpu_custom_call.1} parent=1 // pred_fallthru
      _
    // Predicated region
    $region14: #{tpu_custom_call.1} parent=1 // pred_check
      _
    $region15: #{tpu_custom_call.1} parent=1 // pred_check_branch
      %51 = sbr.rel (0) target = $region17
    $region16: #{tpu_custom_call.1} parent=1 // pred_region
      %s53 = ssub.s32 4096, 4096
      %54 = vsyncadd [#allocation6], %s53
      %s55 = sshll.u32 [#allocation7], 4
      %s56 = int_to_ptr.vmem [resolvable:$true] %s55
      %61 = dma.hbm_to_vmem [thread:$0]  %s3, 4096, %s56, [#allocation6], 128, 128, 8
    $region17: #{tpu_custom_call.1} parent=1 // pred_fallthru
      _
    // Predicated region
    $region18: #{tpu_custom_call.1} parent=1 // pred_check
      _
    $region19: #{tpu_custom_call.1} parent=1 // pred_check_branch
      %63 = sbr.rel (0) target = $region21
    $region20: #{tpu_custom_call.1} parent=1 // pred_region
      _
    $region21: #{tpu_custom_call.1} parent=1 // pred_fallthru
      _
    // Predicated region
    $region22: #{tpu_custom_call.1} parent=1 // pred_check
      _
    $region23: #{tpu_custom_call.1} parent=1 // pred_check_branch
      %65 = sbr.rel (0) target = $region25
    $region24: #{tpu_custom_call.1} parent=1 // pred_region
      %s67 = ssub.s32 2048, 2048
      %68 = vsyncadd [#allocation9], %s67
      %s69 = sshll.u32 [#allocation8], 4
      %s70 = int_to_ptr.vmem [resolvable:$true] %s69
      %75 = dma.hbm_to_vmem [thread:$0]  %s5, 2048, %s70, [#allocation9], 64, 64, 4
    $region25: #{tpu_custom_call.1} parent=1 // pred_fallthru
      _
    // Predicated region
    $region26: #{tpu_custom_call.1} parent=1 // pred_check
      _
    $region27: #{tpu_custom_call.1} parent=1 // pred_check_branch
      %77 = sbr.rel (0) target = $region29
    $region28: #{tpu_custom_call.1} parent=1 // pred_region
      _
    $region29: #{tpu_custom_call.1} parent=1 // pred_fallthru
      _
    // Predicated region
    $region30: #{tpu_custom_call.1} parent=1 // pred_check
      _
    $region31: #{tpu_custom_call.1} parent=1 // pred_check_branch
      %79 = sbr.rel (0) target = $region33
    $region32: #{tpu_custom_call.1} parent=1 // pred_region
      %s81 = ssub.s32 4096, 4096
      %82 = vsyncadd [#allocation9], %s81
      %s83 = sshll.u32 [#allocation10], 4
      %s84 = int_to_ptr.vmem [resolvable:$true] %s83
      %89 = dma.hbm_to_vmem [thread:$0]  %s7, 4096, %s84, [#allocation9], 128, 128, 8
    $region33: #{tpu_custom_call.1} parent=1 // pred_fallthru
      _
    // Predicated region
    $region34: #{tpu_custom_call.1} parent=1 // pred_check
      _
    $region35: #{tpu_custom_call.1} parent=1 // pred_check_branch
      %91 = sbr.rel (0) target = $region37
    $region36: #{tpu_custom_call.1} parent=1 // pred_region
      _
    $region37: #{tpu_custom_call.1} parent=1 // pred_fallthru
      _
    // Predicated region
    $region38: #{tpu_custom_call.1} parent=1 // pred_check
      _
    $region39: #{tpu_custom_call.1} parent=1 // pred_check_branch
      %93 = sbr.rel (0) target = $region41
    $region40: #{tpu_custom_call.1} parent=1 // pred_region
      %s95 = ssub.s32 2048, 2048
      %96 = vsyncadd [#allocation12], %s95
      %s97 = sshll.u32 [#allocation11], 4
      %s98 = int_to_ptr.vmem [resolvable:$true] %s97
      %103 = dma.hbm_to_vmem [thread:$0]  %s9, 2048, %s98, [#allocation12], 64, 64, 4
    $region41: #{tpu_custom_call.1} parent=1 // pred_fallthru
      _
    // Predicated region
    $region42: #{tpu_custom_call.1} parent=1 // pred_check
      _
    $region43: #{tpu_custom_call.1} parent=1 // pred_check_branch
      %105 = sbr.rel (0) target = $region45
    $region44: #{tpu_custom_call.1} parent=1 // pred_region
      _
    $region45: #{tpu_custom_call.1} parent=1 // pred_fallthru
      _
    // Predicated region
    $region46: #{tpu_custom_call.1} parent=1 // pred_check
      _
    $region47: #{tpu_custom_call.1} parent=1 // pred_check_branch
      %107 = sbr.rel (0) target = $region49
    $region48: #{tpu_custom_call.1} parent=1 // pred_region
      %108 = dma.done [#allocation3], 256
    $region49: #{tpu_custom_call.1} parent=1 // pred_fallthru
      _
    // Predicated region
    $region50: #{tpu_custom_call.1} parent=1 // pred_check
      _
    $region51: #{tpu_custom_call.1} parent=1 // pred_check_branch
      %110 = sbr.rel (0) target = $region53
    $region52: #{tpu_custom_call.1} parent=1 // pred_region
      %111 = dma.done [#allocation6], 1024
    $region53: #{tpu_custom_call.1} parent=1 // pred_fallthru
      _
    // Predicated region
    $region54: #{tpu_custom_call.1} parent=1 // pred_check
      _
    $region55: #{tpu_custom_call.1} parent=1 // pred_check_branch
      %113 = sbr.rel (0) target = $region57
    $region56: #{tpu_custom_call.1} parent=1 // pred_region
      %114 = dma.done [#allocation6], 4096
    $region57: #{tpu_custom_call.1} parent=1 // pred_fallthru
      _
    // Predicated region
    $region58: #{tpu_custom_call.1} parent=1 // pred_check
      _
    $region59: #{tpu_custom_call.1} parent=1 // pred_check_branch
      %116 = sbr.rel (0) target = $region61
    $region60: #{tpu_custom_call.1} parent=1 // pred_region
      %117 = dma.done [#allocation9], 2048
    $region61: #{tpu_custom_call.1} parent=1 // pred_fallthru
      _
    // Predicated region
    $region62: #{tpu_custom_call.1} parent=1 // pred_check
      _
    $region63: #{tpu_custom_call.1} parent=1 // pred_check_branch
      %119 = sbr.rel (0) target = $region65
    $region64: #{tpu_custom_call.1} parent=1 // pred_region
      %120 = dma.done [#allocation9], 4096
    $region65: #{tpu_custom_call.1} parent=1 // pred_fallthru
      _
    // Predicated region
    $region66: #{tpu_custom_call.1} parent=1 // pred_check
      _
    $region67: #{tpu_custom_call.1} parent=1 // pred_check_branch
      %122 = sbr.rel (0) target = $region69
    $region68: #{tpu_custom_call.1} parent=1 // pred_region
      %123 = dma.done [#allocation12], 2048
    $region69: #{tpu_custom_call.1} parent=1 // pred_fallthru
      _
    %v125 = vld [vmem:[#allocation2] sm:$0xff]
    %v126 = vld [vmem:[#allocation2 + $0x8] sm:$0xff]
    %v127 = vpack.c.bf16 %v126, %v125
    %v128 = vld [vmem:[#allocation5] sm:$0xff]
    %v129 = vld [vmem:[#allocation5 + $0x8] sm:$0xff]
    %v130 = vld [vmem:[#allocation5 + $0x10] sm:$0xff]
    %v131 = vld [vmem:[#allocation5 + $0x18] sm:$0xff]
    %v132 = vld [vmem:[#allocation5 + $0x20] sm:$0xff]
    %v133 = vld [vmem:[#allocation5 + $0x28] sm:$0xff]
    %v134 = vld [vmem:[#allocation5 + $0x30] sm:$0xff]
    %v135 = vld [vmem:[#allocation5 + $0x38] sm:$0xff]
    %v136 = vld [vmem:[%s2] sm:$0xf]
    %v138 = vlaneseq
    %v139 = vshrl.u32 %v138, 7
    %v140 = vsub.s32 0, %v139
    %v141 = vrot.slane %v136, %v140
    %v142 = vlaneseq
    %v143 = vshrl.u32 %v142, 7
    %v144 = vsub.s32 1, %v143
    %v145 = vrot.slane %v136, %v144
    %v146 = vlaneseq
    %v147 = vshrl.u32 %v146, 7
    %v148 = vsub.s32 2, %v147
    %v149 = vrot.slane %v136, %v148
    %v150 = vlaneseq
    %v151 = vshrl.u32 %v150, 7
    %v152 = vsub.s32 3, %v151
    %v153 = vrot.slane %v136, %v152
    %v166 = vunpack.c.l.b16 %v128
    %v167 = vunpack.c.h.b16 %v128
    %v168 = vunpack.c.l.b16 %v129
    %v169 = vunpack.c.h.b16 %v129
    %v170 = vunpack.c.l.b16 %v130
    %v171 = vunpack.c.h.b16 %v130
    %v172 = vunpack.c.l.b16 %v131
    %v173 = vunpack.c.h.b16 %v131
    %v174 = vunpack.c.l.b16 %v132
    %v175 = vunpack.c.h.b16 %v132
    %v176 = vunpack.c.l.b16 %v133
    %v177 = vunpack.c.h.b16 %v133
    %v178 = vunpack.c.l.b16 %v134
    %v179 = vunpack.c.h.b16 %v134
    %v180 = vunpack.c.l.b16 %v135
    %v181 = vunpack.c.h.b16 %v135
    %v182 = vpack.c.b16 %v170, %v166
    %v183 = vpack.c.b16 %v171, %v167
    %v184 = vpack.c.b16 %v172, %v168
    %v185 = vpack.c.b16 %v173, %v169
    %v186 = vpack.c.b16 %v178, %v174
    %v187 = vpack.c.b16 %v179, %v175
    %v188 = vpack.c.b16 %v180, %v176
    %v189 = vpack.c.b16 %v181, %v177
    %vm198 = vcmask 261120
    %v200 = vsel %vm198, %v127, 0
    %202 = vmatprep.subr.bf16.mxu0 %v183
    %203 = vmatpush1.bf16.msra.mxu0 %v182
    %204 = vmatprep.subr.bf16.mxu0 %v187
    %205 = vmatpush1.bf16.msra.mxu0 %v186
    %206 = vmatprep.subr.bf16.mxu0 0
    %207 = vmatpush1.bf16.msra.mxu0 0
    %208 = vmatprep.subr.bf16.mxu0 0
    %209 = vmatpush1.bf16.msra.mxu0 0
    %210 = vmatprep.subr.bf16.mxu0 0
    %211 = vmatpush1.bf16.msra.mxu0 0
    %212 = vmatprep.subr.bf16.mxu0 0
    %213 = vmatpush1.bf16.msra.mxu0 0
    %214 = vmatprep.subr.bf16.mxu0 0
    %215 = vmatpush1.bf16.msra.mxu0 0
    %216 = vmatprep.subr.bf16.mxu0 0
    %217 = vmatpush1.bf16.msra.mxu0 0
    %218 = vmatprep.subr.bf16.mxu0 0
    %219 = vmatpush1.bf16.msra.mxu0 0
    %220 = vmatprep.subr.bf16.mxu0 0
    %221 = vmatpush1.bf16.msra.mxu0 0
    %222 = vmatprep.subr.bf16.mxu0 0
    %223 = vmatpush1.bf16.msra.mxu0 0
    %224 = vmatprep.subr.bf16.mxu0 0
    %225 = vmatpush1.bf16.msra.mxu0 0
    %226 = vmatprep.subr.bf16.mxu0 0
    %227 = vmatpush1.bf16.msra.mxu0 0
    %228 = vmatprep.subr.bf16.mxu0 0
    %229 = vmatpush1.bf16.msra.mxu0 0
    %230 = vmatprep.subr.bf16.mxu0 0
    %231 = vmatpush1.bf16.msra.mxu0 0
    %232 = vmatprep.subr.bf16.mxu0 0
    %233 = vmatpush1.bf16.msra.mxu0 0
    %234 = vmatprep.mubr.bf16.mxu0 0
    %235 = vmatmul.mubr.bf16.gmra.mrb[0].mxu0 %v200
    %v236 = vpop.f32.mrb[0].mxu0
    %v237 = vadd.f32 %v141, %v236
    %v238 = vpop.f32.mrb[0].mxu0
    %v239 = vadd.f32 %v145, %v238
    %v240 = vpop.f32.mrb[0].mxu0
    %v241 = vadd.f32 %v141, %v240
    %v242 = vpop.f32.mrb[0].mxu0
    %v243 = vadd.f32 %v145, %v242
    %244 = vdwg.mxu0
    %245 = vmatprep.subr.bf16.mxu0 %v185
    %246 = vmatpush1.bf16.msra.mxu0 %v184
    %247 = vmatprep.subr.bf16.mxu0 %v189
    %248 = vmatpush1.bf16.msra.mxu0 %v188
    %249 = vmatprep.subr.bf16.mxu0 0
    %250 = vmatpush1.bf16.msra.mxu0 0
    %251 = vmatprep.subr.bf16.mxu0 0
    %252 = vmatpush1.bf16.msra.mxu0 0
    %253 = vmatprep.subr.bf16.mxu0 0
    %254 = vmatpush1.bf16.msra.mxu0 0
    %255 = vmatprep.subr.bf16.mxu0 0
    %256 = vmatpush1.bf16.msra.mxu0 0
    %257 = vmatprep.subr.bf16.mxu0 0
    %258 = vmatpush1.bf16.msra.mxu0 0
    %259 = vmatprep.subr.bf16.mxu0 0
    %260 = vmatpush1.bf16.msra.mxu0 0
    %261 = vmatprep.subr.bf16.mxu0 0
    %262 = vmatpush1.bf16.msra.mxu0 0
    %263 = vmatprep.subr.bf16.mxu0 0
    %264 = vmatpush1.bf16.msra.mxu0 0
    %265 = vmatprep.subr.bf16.mxu0 0
    %266 = vmatpush1.bf16.msra.mxu0 0
    %267 = vmatprep.subr.bf16.mxu0 0
    %268 = vmatpush1.bf16.msra.mxu0 0
    %269 = vmatprep.subr.bf16.mxu0 0
    %270 = vmatpush1.bf16.msra.mxu0 0
    %271 = vmatprep.subr.bf16.mxu0 0
    %272 = vmatpush1.bf16.msra.mxu0 0
    %273 = vmatprep.subr.bf16.mxu0 0
    %274 = vmatpush1.bf16.msra.mxu0 0
    %275 = vmatprep.subr.bf16.mxu0 0
    %276 = vmatpush1.bf16.msra.mxu0 0
    %277 = vmatprep.mubr.bf16.mxu0 0
    %278 = vmatmul.mubr.bf16.gmra.mrb[0].mxu0 %v200
    %v279 = vpop.f32.mrb[0].mxu0
    %v280 = vadd.f32 %v149, %v279
    %v281 = vpop.f32.mrb[0].mxu0
    %v282 = vadd.f32 %v153, %v281
    %v283 = vpop.f32.mrb[0].mxu0
    %v284 = vadd.f32 %v149, %v283
    %v285 = vpop.f32.mrb[0].mxu0
    %v286 = vadd.f32 %v153, %v285
    %287 = vdwg.mxu0
    %v288 = vmax.f32 %v237, 0.0
    %v289 = vmax.f32 %v239, 0.0
    %v290 = vmax.f32 %v280, 0.0
    %v291 = vmax.f32 %v282, 0.0
    %v292 = vmax.f32 %v241, 0.0
    %v293 = vmax.f32 %v243, 0.0
    %v294 = vmax.f32 %v284, 0.0
    %v295 = vmax.f32 %v286, 0.0
    %v296 = vpack.c.bf16 %v292, %v288
    %v297 = vpack.c.bf16 %v293, %v289
    %v298 = vpack.c.bf16 %v294, %v290
    %v299 = vpack.c.bf16 %v295, %v291
    %v300 = vld [vmem:[#allocation7] sm:$0xff]
    %v301 = vld [vmem:[#allocation7 + $0x8] sm:$0xff]
    %v302 = vld [vmem:[#allocation7 + $0x10] sm:$0xff]
    %v303 = vld [vmem:[#allocation7 + $0x18] sm:$0xff]
    %v304 = vld [vmem:[#allocation7 + $0x20] sm:$0xff]
    %v305 = vld [vmem:[#allocation7 + $0x28] sm:$0xff]
    %v306 = vld [vmem:[#allocation7 + $0x30] sm:$0xff]
    %v307 = vld [vmem:[#allocation7 + $0x38] sm:$0xff]
    %v308 = vld [vmem:[#allocation7 + $0x40] sm:$0xff]
    %v309 = vld [vmem:[#allocation7 + $0x48] sm:$0xff]
    %v310 = vld [vmem:[#allocation7 + $0x50] sm:$0xff]
    %v311 = vld [vmem:[#allocation7 + $0x58] sm:$0xff]
    %v312 = vld [vmem:[#allocation7 + $0x60] sm:$0xff]
    %v313 = vld [vmem:[#allocation7 + $0x68] sm:$0xff]
    %v314 = vld [vmem:[#allocation7 + $0x70] sm:$0xff]
    %v315 = vld [vmem:[#allocation7 + $0x78] sm:$0xff]
    %v316 = vld [vmem:[#allocation7 + $0x80] sm:$0xff]
    %v317 = vld [vmem:[#allocation7 + $0x88] sm:$0xff]
    %v318 = vld [vmem:[#allocation7 + $0x90] sm:$0xff]
    %v319 = vld [vmem:[#allocation7 + $0x98] sm:$0xff]
    %v320 = vld [vmem:[#allocation7 + $0xa0] sm:$0xff]
    %v321 = vld [vmem:[#allocation7 + $0xa8] sm:$0xff]
    %v322 = vld [vmem:[#allocation7 + $0xb0] sm:$0xff]
    %v323 = vld [vmem:[#allocation7 + $0xb8] sm:$0xff]
    %v324 = vld [vmem:[#allocation7 + $0xc0] sm:$0xff]
    %v325 = vld [vmem:[#allocation7 + $0xc8] sm:$0xff]
    %v326 = vld [vmem:[#allocation7 + $0xd0] sm:$0xff]
    %v327 = vld [vmem:[#allocation7 + $0xd8] sm:$0xff]
    %v328 = vld [vmem:[#allocation7 + $0xe0] sm:$0xff]
    %v329 = vld [vmem:[#allocation7 + $0xe8] sm:$0xff]
    %v330 = vld [vmem:[#allocation7 + $0xf0] sm:$0xff]
    %v331 = vld [vmem:[#allocation7 + $0xf8] sm:$0xff]
    %v332 = vld [vmem:[%s4] sm:$0x3]
    %v334 = vlaneseq
    %v335 = vshrl.u32 %v334, 7
    %v336 = vsub.s32 0, %v335
    %v337 = vrot.slane %v332, %v336
    %v338 = vlaneseq
    %v339 = vshrl.u32 %v338, 7
    %v340 = vsub.s32 1, %v339
    %v341 = vrot.slane %v332, %v340
    %v376 = vunpack.c.l.b16 %v300
    %v377 = vunpack.c.h.b16 %v300
    %v378 = vunpack.c.l.b16 %v301
    %v379 = vunpack.c.h.b16 %v301
    %v380 = vunpack.c.l.b16 %v302
    %v381 = vunpack.c.h.b16 %v302
    %v382 = vunpack.c.l.b16 %v303
    %v383 = vunpack.c.h.b16 %v303
    %v384 = vunpack.c.l.b16 %v304
    %v385 = vunpack.c.h.b16 %v304
    %v386 = vunpack.c.l.b16 %v305
    %v387 = vunpack.c.h.b16 %v305
    %v388 = vunpack.c.l.b16 %v306
    %v389 = vunpack.c.h.b16 %v306
    %v390 = vunpack.c.l.b16 %v307
    %v391 = vunpack.c.h.b16 %v307
    %v392 = vunpack.c.l.b16 %v308
    %v393 = vunpack.c.h.b16 %v308
    %v394 = vunpack.c.l.b16 %v309
    %v395 = vunpack.c.h.b16 %v309
    %v396 = vunpack.c.l.b16 %v310
    %v397 = vunpack.c.h.b16 %v310
    %v398 = vunpack.c.l.b16 %v311
    %v399 = vunpack.c.h.b16 %v311
    %v400 = vunpack.c.l.b16 %v312
    %v401 = vunpack.c.h.b16 %v312
    %v402 = vunpack.c.l.b16 %v313
    %v403 = vunpack.c.h.b16 %v313
    %v404 = vunpack.c.l.b16 %v314
    %v405 = vunpack.c.h.b16 %v314
    %v406 = vunpack.c.l.b16 %v315
    %v407 = vunpack.c.h.b16 %v315
    %v408 = vunpack.c.l.b16 %v316
    %v409 = vunpack.c.h.b16 %v316
    %v410 = vunpack.c.l.b16 %v317
    %v411 = vunpack.c.h.b16 %v317
    %v412 = vunpack.c.l.b16 %v318
    %v413 = vunpack.c.h.b16 %v318
    %v414 = vunpack.c.l.b16 %v319
    %v415 = vunpack.c.h.b16 %v319
    %v416 = vunpack.c.l.b16 %v320
    %v417 = vunpack.c.h.b16 %v320
    %v418 = vunpack.c.l.b16 %v321
    %v419 = vunpack.c.h.b16 %v321
    %v420 = vunpack.c.l.b16 %v322
    %v421 = vunpack.c.h.b16 %v322
    %v422 = vunpack.c.l.b16 %v323
    %v423 = vunpack.c.h.b16 %v323
    %v424 = vunpack.c.l.b16 %v324
    %v425 = vunpack.c.h.b16 %v324
    %v426 = vunpack.c.l.b16 %v325
    %v427 = vunpack.c.h.b16 %v325
    %v428 = vunpack.c.l.b16 %v326
    %v429 = vunpack.c.h.b16 %v326
    %v430 = vunpack.c.l.b16 %v327
    %v431 = vunpack.c.h.b16 %v327
    %v432 = vunpack.c.l.b16 %v328
    %v433 = vunpack.c.h.b16 %v328
    %v434 = vunpack.c.l.b16 %v329
    %v435 = vunpack.c.h.b16 %v329
    %v436 = vunpack.c.l.b16 %v330
    %v437 = vunpack.c.h.b16 %v330
    %v438 = vunpack.c.l.b16 %v331
    %v439 = vunpack.c.h.b16 %v331
    %v440 = vpack.c.b16 %v378, %v376
    %v441 = vpack.c.b16 %v379, %v377
    %v442 = vpack.c.b16 %v382, %v380
    %v443 = vpack.c.b16 %v383, %v381
    %v444 = vpack.c.b16 %v386, %v384
    %v445 = vpack.c.b16 %v387, %v385
    %v446 = vpack.c.b16 %v390, %v388
    %v447 = vpack.c.b16 %v391, %v389
    %v448 = vpack.c.b16 %v394, %v392
    %v449 = vpack.c.b16 %v395, %v393
    %v450 = vpack.c.b16 %v398, %v396
    %v451 = vpack.c.b16 %v399, %v397
    %v452 = vpack.c.b16 %v402, %v400
    %v453 = vpack.c.b16 %v403, %v401
    %v454 = vpack.c.b16 %v406, %v404
    %v455 = vpack.c.b16 %v407, %v405
    %v456 = vpack.c.b16 %v410, %v408
    %v457 = vpack.c.b16 %v411, %v409
    %v458 = vpack.c.b16 %v414, %v412
    %v459 = vpack.c.b16 %v415, %v413
    %v460 = vpack.c.b16 %v418, %v416
    %v461 = vpack.c.b16 %v419, %v417
    %v462 = vpack.c.b16 %v422, %v420
    %v463 = vpack.c.b16 %v423, %v421
    %v464 = vpack.c.b16 %v426, %v424
    %v465 = vpack.c.b16 %v427, %v425
    %v466 = vpack.c.b16 %v430, %v428
    %v467 = vpack.c.b16 %v431, %v429
    %v468 = vpack.c.b16 %v434, %v432
    %v469 = vpack.c.b16 %v435, %v433
    %v470 = vpack.c.b16 %v438, %v436
    %v471 = vpack.c.b16 %v439, %v437
    %504 = vmatprep.subr.bf16.mxu0 %v441
    %505 = vmatpush1.bf16.msra.mxu0 %v440
    %506 = vmatprep.subr.bf16.mxu0 %v443
    %507 = vmatpush1.bf16.msra.mxu0 %v442
    %508 = vmatprep.subr.bf16.mxu0 %v445
    %509 = vmatpush1.bf16.msra.mxu0 %v444
    %510 = vmatprep.subr.bf16.mxu0 %v447
    %511 = vmatpush1.bf16.msra.mxu0 %v446
    %512 = vmatprep.subr.bf16.mxu0 %v449
    %513 = vmatpush1.bf16.msra.mxu0 %v448
    %514 = vmatprep.subr.bf16.mxu0 %v451
    %515 = vmatpush1.bf16.msra.mxu0 %v450
    %516 = vmatprep.subr.bf16.mxu0 %v453
    %517 = vmatpush1.bf16.msra.mxu0 %v452
    %518 = vmatprep.subr.bf16.mxu0 %v455
    %519 = vmatpush1.bf16.msra.mxu0 %v454
    %520 = vmatprep.subr.bf16.mxu0 %v457
    %521 = vmatpush1.bf16.msra.mxu0 %v456
    %522 = vmatprep.subr.bf16.mxu0 %v459
    %523 = vmatpush1.bf16.msra.mxu0 %v458
    %524 = vmatprep.subr.bf16.mxu0 %v461
    %525 = vmatpush1.bf16.msra.mxu0 %v460
    %526 = vmatprep.subr.bf16.mxu0 %v463
    %527 = vmatpush1.bf16.msra.mxu0 %v462
    %528 = vmatprep.subr.bf16.mxu0 %v465
    %529 = vmatpush1.bf16.msra.mxu0 %v464
    %530 = vmatprep.subr.bf16.mxu0 %v467
    %531 = vmatpush1.bf16.msra.mxu0 %v466
    %532 = vmatprep.subr.bf16.mxu0 %v469
    %533 = vmatpush1.bf16.msra.mxu0 %v468
    %534 = vmatprep.subr.bf16.mxu0 %v471
    %535 = vmatpush1.bf16.msra.mxu0 %v470
    %536 = vmatprep.mubr.bf16.mxu0 %v297
    %537 = vmatmul.mubr.bf16.gmra.mrb[0].mxu0 %v296
    %v538 = vpop.f32.mrb[0].mxu0
    %v539 = vadd.f32 %v337, %v538
    %v540 = vpop.f32.mrb[0].mxu0
    %v541 = vadd.f32 %v341, %v540
    %v542 = vpop.f32.mrb[0].mxu0
    %v543 = vadd.f32 %v337, %v542
    %v544 = vpop.f32.mrb[0].mxu0
    %v545 = vadd.f32 %v341, %v544
    %546 = vdwg.mxu0
    %v547 = vmax.f32 %v539, 0.0
    %v548 = vmax.f32 %v541, 0.0
    %v549 = vmax.f32 %v543, 0.0
    %v550 = vmax.f32 %v545, 0.0
    %v551 = vpack.c.bf16 %v549, %v547
    %v552 = vpack.c.bf16 %v550, %v548
    %v553 = vld [vmem:[#allocation8] sm:$0xf]
    %v554 = vld [vmem:[#allocation8 + $0x4] sm:$0xf]
    %v555 = vld [vmem:[#allocation8 + $0x8] sm:$0xf]
    %v556 = vld [vmem:[#allocation8 + $0xc] sm:$0xf]
    %v557 = vld [vmem:[#allocation8 + $0x10] sm:$0xf]
    %v558 = vld [vmem:[#allocation8 + $0x14] sm:$0xf]
    %v559 = vld [vmem:[#allocation8 + $0x18] sm:$0xf]
    %v560 = vld [vmem:[#allocation8 + $0x1c] sm:$0xf]
    %v561 = vld [vmem:[#allocation8 + $0x20] sm:$0xf]
    %v562 = vld [vmem:[#allocation8 + $0x24] sm:$0xf]
    %v563 = vld [vmem:[#allocation8 + $0x28] sm:$0xf]
    %v564 = vld [vmem:[#allocation8 + $0x2c] sm:$0xf]
    %v565 = vld [vmem:[#allocation8 + $0x30] sm:$0xf]
    %v566 = vld [vmem:[#allocation8 + $0x34] sm:$0xf]
    %v567 = vld [vmem:[#allocation8 + $0x38] sm:$0xf]
    %v568 = vld [vmem:[#allocation8 + $0x3c] sm:$0xf]
    %v569 = vld [vmem:[#allocation8 + $0x40] sm:$0xf]
    %v570 = vld [vmem:[#allocation8 + $0x44] sm:$0xf]
    %v571 = vld [vmem:[#allocation8 + $0x48] sm:$0xf]
    %v572 = vld [vmem:[#allocation8 + $0x4c] sm:$0xf]
    %v573 = vld [vmem:[#allocation8 + $0x50] sm:$0xf]
    %v574 = vld [vmem:[#allocation8 + $0x54] sm:$0xf]
    %v575 = vld [vmem:[#allocation8 + $0x58] sm:$0xf]
    %v576 = vld [vmem:[#allocation8 + $0x5c] sm:$0xf]
    %v577 = vld [vmem:[#allocation8 + $0x60] sm:$0xf]
    %v578 = vld [vmem:[#allocation8 + $0x64] sm:$0xf]
    %v579 = vld [vmem:[#allocation8 + $0x68] sm:$0xf]
    %v580 = vld [vmem:[#allocation8 + $0x6c] sm:$0xf]
    %v581 = vld [vmem:[#allocation8 + $0x70] sm:$0xf]
    %v582 = vld [vmem:[#allocation8 + $0x74] sm:$0xf]
    %v583 = vld [vmem:[#allocation8 + $0x78] sm:$0xf]
    %v584 = vld [vmem:[#allocation8 + $0x7c] sm:$0xf]
    %v585 = vld [vmem:[%s6] sm:$0x1]
    %v587 = vlaneseq
    %v588 = vshrl.u32 %v587, 7
    %v589 = vsub.s32 0, %v588
    %v590 = vrot.slane %v585, %v589
    %v624 = vunpack.c.l.b16 %v553
    %v625 = vunpack.c.l.b16 %v554
    %v626 = vunpack.c.l.b16 %v555
    %v627 = vunpack.c.l.b16 %v556
    %v628 = vunpack.c.l.b16 %v557
    %v629 = vunpack.c.l.b16 %v558
    %v630 = vunpack.c.l.b16 %v559
    %v631 = vunpack.c.l.b16 %v560
    %v632 = vunpack.c.l.b16 %v561
    %v633 = vunpack.c.l.b16 %v562
    %v634 = vunpack.c.l.b16 %v563
    %v635 = vunpack.c.l.b16 %v564
    %v636 = vunpack.c.l.b16 %v565
    %v637 = vunpack.c.l.b16 %v566
    %v638 = vunpack.c.l.b16 %v567
    %v639 = vunpack.c.l.b16 %v568
    %v640 = vunpack.c.l.b16 %v569
    %v641 = vunpack.c.l.b16 %v570
    %v642 = vunpack.c.l.b16 %v571
    %v643 = vunpack.c.l.b16 %v572
    %v644 = vunpack.c.l.b16 %v573
    %v645 = vunpack.c.l.b16 %v574
    %v646 = vunpack.c.l.b16 %v575
    %v647 = vunpack.c.l.b16 %v576
    %v648 = vunpack.c.l.b16 %v577
    %v649 = vunpack.c.l.b16 %v578
    %v650 = vunpack.c.l.b16 %v579
    %v651 = vunpack.c.l.b16 %v580
    %v652 = vunpack.c.l.b16 %v581
    %v653 = vunpack.c.l.b16 %v582
    %v654 = vunpack.c.l.b16 %v583
    %v655 = vunpack.c.l.b16 %v584
    %v656 = vpack.c.b16 %v625, %v624
    %v657 = vpack.c.b16 %v627, %v626
    %v658 = vpack.c.b16 %v629, %v628
    %v659 = vpack.c.b16 %v631, %v630
    %v660 = vpack.c.b16 %v633, %v632
    %v661 = vpack.c.b16 %v635, %v634
    %v662 = vpack.c.b16 %v637, %v636
    %v663 = vpack.c.b16 %v639, %v638
    %v664 = vpack.c.b16 %v641, %v640
    %v665 = vpack.c.b16 %v643, %v642
    %v666 = vpack.c.b16 %v645, %v644
    %v667 = vpack.c.b16 %v647, %v646
    %v668 = vpack.c.b16 %v649, %v648
    %v669 = vpack.c.b16 %v651, %v650
    %v670 = vpack.c.b16 %v653, %v652
    %v671 = vpack.c.b16 %v655, %v654
    %688 = vmatprep.subr.bf16.mxu0 0
    %689 = vmatpush1.bf16.msra.mxu0 %v656
    %690 = vmatprep.subr.bf16.mxu0 0
    %691 = vmatpush1.bf16.msra.mxu0 %v657
    %692 = vmatprep.subr.bf16.mxu0 0
    %693 = vmatpush1.bf16.msra.mxu0 %v658
    %694 = vmatprep.subr.bf16.mxu0 0
    %695 = vmatpush1.bf16.msra.mxu0 %v659
    %696 = vmatprep.subr.bf16.mxu0 0
    %697 = vmatpush1.bf16.msra.mxu0 %v660
    %698 = vmatprep.subr.bf16.mxu0 0
    %699 = vmatpush1.bf16.msra.mxu0 %v661
    %700 = vmatprep.subr.bf16.mxu0 0
    %701 = vmatpush1.bf16.msra.mxu0 %v662
    %702 = vmatprep.subr.bf16.mxu0 0
    %703 = vmatpush1.bf16.msra.mxu0 %v663
    %704 = vmatprep.subr.bf16.mxu0 0
    %705 = vmatpush1.bf16.msra.mxu0 %v664
    %706 = vmatprep.subr.bf16.mxu0 0
    %707 = vmatpush1.bf16.msra.mxu0 %v665
    %708 = vmatprep.subr.bf16.mxu0 0
    %709 = vmatpush1.bf16.msra.mxu0 %v666
    %710 = vmatprep.subr.bf16.mxu0 0
    %711 = vmatpush1.bf16.msra.mxu0 %v667
    %712 = vmatprep.subr.bf16.mxu0 0
    %713 = vmatpush1.bf16.msra.mxu0 %v668
    %714 = vmatprep.subr.bf16.mxu0 0
    %715 = vmatpush1.bf16.msra.mxu0 %v669
    %716 = vmatprep.subr.bf16.mxu0 0
    %717 = vmatpush1.bf16.msra.mxu0 %v670
    %718 = vmatprep.subr.bf16.mxu0 0
    %719 = vmatpush1.bf16.msra.mxu0 %v671
    %720 = vmatprep.mubr.bf16.mxu0 %v552
    %721 = vmatmul.mubr.bf16.gmra.mrb[0].mxu0 %v551
    %v722 = vpop.f32.mrb[0].mxu0
    %v723 = vadd.f32 %v590, %v722
    %v724 = vpop.f32.mrb[0].mxu0
    %v725 = vpop.f32.mrb[0].mxu0
    %v726 = vadd.f32 %v590, %v725
    %v727 = vpop.f32.mrb[0].mxu0
    %728 = vdwg.mxu0
    %v729 = vmax.f32 %v723, 0.0
    %v730 = vmax.f32 %v726, 0.0
    %v731 = vlaneseq
    %v732 = vand.u32 %v731, 127
    %vm733 = vcmp.lt.s32.totalorder %v732, 3
    %v734 = vsel %vm733, %v729, -1e+30
    %v735 = vsel %vm733, %v730, -1e+30
    %736 = vmax.xlane.f32.xlu0 %v734
    %v737 = vpop.xlane.xlu0 %736
    %738 = vmax.xlane.f32.xlu0 %v735
    %v739 = vpop.xlane.xlu0 %738
    %v740 = vsub.f32 %v734, %v737
    %v741 = vsub.f32 %v735, %v739
    %v742 = vmul.f32 %v740, 1.442695
    %v743 = vpow.pop %v742
    %v744 = vmul.f32 %v741, 1.442695
    %v745 = vpow.pop %v744
    %v746 = vsel %vm733, %v743, 0.0
    %v747 = vsel %vm733, %v745, 0.0
    %748 = vadd.xlane.f32.xlu0 %v746
    %v749 = vpop.xlane.xlu0 %748
    %750 = vadd.xlane.f32.xlu0 %v747
    %v751 = vpop.xlane.xlu0 %750
    %v752 = vlog2.pop %v749
    %v753 = vmul.f32 %v752, 0.6931472
    %v754 = vlog2.pop %v751
    %v755 = vmul.f32 %v754, 0.6931472
    %v756 = vsub.f32 %v740, %v753
    %v757 = vsub.f32 %v741, %v755
    %758 = vxpose.xlu0.b32.start [1/16] %v756, 128
    %759 = vxpose.xlu0.b32.cont [2/16] %v757, 128
    %760 = vxpose.xlu0.b32.cont [3/16] 0.0, 128
    %761 = vxpose.xlu0.b32.cont [4/16] 0.0, 128
    %762 = vxpose.xlu0.b32.cont [5/16] 0.0, 128
    %763 = vxpose.xlu0.b32.cont [6/16] 0.0, 128
    %764 = vxpose.xlu0.b32.cont [7/16] 0.0, 128
    %765 = vxpose.xlu0.b32.cont [8/16] 0.0, 128
    %766 = vxpose.xlu0.b32.cont [9/16] 0.0, 128
    %767 = vxpose.xlu0.b32.cont [10/16] 0.0, 128
    %768 = vxpose.xlu0.b32.cont [11/16] 0.0, 128
    %769 = vxpose.xlu0.b32.cont [12/16] 0.0, 128
    %770 = vxpose.xlu0.b32.cont [13/16] 0.0, 128
    %771 = vxpose.xlu0.b32.cont [14/16] 0.0, 128
    %772 = vxpose.xlu0.b32.cont [15/16] 0.0, 128
    %773 = vxpose.xlu0.b32.end [16/16] 0.0, 128
    %v774 = vpop.trf.xlu0
    %v775 = vpop.trf.xlu0
    %v776 = vpop.trf.xlu0
    %v777 = vpop.trf.xlu0
    %v778 = vpop.trf.xlu0
    %v779 = vpop.trf.xlu0
    %v780 = vpop.trf.xlu0
    %v781 = vpop.trf.xlu0
    %v782 = vpop.trf.xlu0
    %v783 = vpop.trf.xlu0
    %v784 = vpop.trf.xlu0
    %v785 = vpop.trf.xlu0
    %v786 = vpop.trf.xlu0
    %v787 = vpop.trf.xlu0
    %v788 = vpop.trf.xlu0
    %v789 = vpop.trf.xlu0
    %vm790 = vcmask 130048
    %791 = vst.msk [vmem:[#allocation13] sm:$0xff] %vm790, %v774
    %v792 = vld [vmem:[#allocation10] sm:$0xff]
    %v793 = vld [vmem:[#allocation10 + $0x8] sm:$0xff]
    %v794 = vld [vmem:[#allocation10 + $0x10] sm:$0xff]
    %v795 = vld [vmem:[#allocation10 + $0x18] sm:$0xff]
    %v796 = vld [vmem:[#allocation10 + $0x20] sm:$0xff]
    %v797 = vld [vmem:[#allocation10 + $0x28] sm:$0xff]
    %v798 = vld [vmem:[#allocation10 + $0x30] sm:$0xff]
    %v799 = vld [vmem:[#allocation10 + $0x38] sm:$0xff]
    %v800 = vld [vmem:[#allocation10 + $0x40] sm:$0xff]
    %v801 = vld [vmem:[#allocation10 + $0x48] sm:$0xff]
    %v802 = vld [vmem:[#allocation10 + $0x50] sm:$0xff]
    %v803 = vld [vmem:[#allocation10 + $0x58] sm:$0xff]
    %v804 = vld [vmem:[#allocation10 + $0x60] sm:$0xff]
    %v805 = vld [vmem:[#allocation10 + $0x68] sm:$0xff]
    %v806 = vld [vmem:[#allocation10 + $0x70] sm:$0xff]
    %v807 = vld [vmem:[#allocation10 + $0x78] sm:$0xff]
    %v808 = vld [vmem:[#allocation10 + $0x80] sm:$0xff]
    %v809 = vld [vmem:[#allocation10 + $0x88] sm:$0xff]
    %v810 = vld [vmem:[#allocation10 + $0x90] sm:$0xff]
    %v811 = vld [vmem:[#allocation10 + $0x98] sm:$0xff]
    %v812 = vld [vmem:[#allocation10 + $0xa0] sm:$0xff]
    %v813 = vld [vmem:[#allocation10 + $0xa8] sm:$0xff]
    %v814 = vld [vmem:[#allocation10 + $0xb0] sm:$0xff]
    %v815 = vld [vmem:[#allocation10 + $0xb8] sm:$0xff]
    %v816 = vld [vmem:[#allocation10 + $0xc0] sm:$0xff]
    %v817 = vld [vmem:[#allocation10 + $0xc8] sm:$0xff]
    %v818 = vld [vmem:[#allocation10 + $0xd0] sm:$0xff]
    %v819 = vld [vmem:[#allocation10 + $0xd8] sm:$0xff]
    %v820 = vld [vmem:[#allocation10 + $0xe0] sm:$0xff]
    %v821 = vld [vmem:[#allocation10 + $0xe8] sm:$0xff]
    %v822 = vld [vmem:[#allocation10 + $0xf0] sm:$0xff]
    %v823 = vld [vmem:[#allocation10 + $0xf8] sm:$0xff]
    %v824 = vld [vmem:[%s8] sm:$0x3]
    %v826 = vlaneseq
    %v827 = vshrl.u32 %v826, 7
    %v828 = vsub.s32 0, %v827
    %v829 = vrot.slane %v824, %v828
    %v830 = vlaneseq
    %v831 = vshrl.u32 %v830, 7
    %v832 = vsub.s32 1, %v831
    %v833 = vrot.slane %v824, %v832
    %v868 = vunpack.c.l.b16 %v792
    %v869 = vunpack.c.h.b16 %v792
    %v870 = vunpack.c.l.b16 %v793
    %v871 = vunpack.c.h.b16 %v793
    %v872 = vunpack.c.l.b16 %v794
    %v873 = vunpack.c.h.b16 %v794
    %v874 = vunpack.c.l.b16 %v795
    %v875 = vunpack.c.h.b16 %v795
    %v876 = vunpack.c.l.b16 %v796
    %v877 = vunpack.c.h.b16 %v796
    %v878 = vunpack.c.l.b16 %v797
    %v879 = vunpack.c.h.b16 %v797
    %v880 = vunpack.c.l.b16 %v798
    %v881 = vunpack.c.h.b16 %v798
    %v882 = vunpack.c.l.b16 %v799
    %v883 = vunpack.c.h.b16 %v799
    %v884 = vunpack.c.l.b16 %v800
    %v885 = vunpack.c.h.b16 %v800
    %v886 = vunpack.c.l.b16 %v801
    %v887 = vunpack.c.h.b16 %v801
    %v888 = vunpack.c.l.b16 %v802
    %v889 = vunpack.c.h.b16 %v802
    %v890 = vunpack.c.l.b16 %v803
    %v891 = vunpack.c.h.b16 %v803
    %v892 = vunpack.c.l.b16 %v804
    %v893 = vunpack.c.h.b16 %v804
    %v894 = vunpack.c.l.b16 %v805
    %v895 = vunpack.c.h.b16 %v805
    %v896 = vunpack.c.l.b16 %v806
    %v897 = vunpack.c.h.b16 %v806
    %v898 = vunpack.c.l.b16 %v807
    %v899 = vunpack.c.h.b16 %v807
    %v900 = vunpack.c.l.b16 %v808
    %v901 = vunpack.c.h.b16 %v808
    %v902 = vunpack.c.l.b16 %v809
    %v903 = vunpack.c.h.b16 %v809
    %v904 = vunpack.c.l.b16 %v810
    %v905 = vunpack.c.h.b16 %v810
    %v906 = vunpack.c.l.b16 %v811
    %v907 = vunpack.c.h.b16 %v811
    %v908 = vunpack.c.l.b16 %v812
    %v909 = vunpack.c.h.b16 %v812
    %v910 = vunpack.c.l.b16 %v813
    %v911 = vunpack.c.h.b16 %v813
    %v912 = vunpack.c.l.b16 %v814
    %v913 = vunpack.c.h.b16 %v814
    %v914 = vunpack.c.l.b16 %v815
    %v915 = vunpack.c.h.b16 %v815
    %v916 = vunpack.c.l.b16 %v816
    %v917 = vunpack.c.h.b16 %v816
    %v918 = vunpack.c.l.b16 %v817
    %v919 = vunpack.c.h.b16 %v817
    %v920 = vunpack.c.l.b16 %v818
    %v921 = vunpack.c.h.b16 %v818
    %v922 = vunpack.c.l.b16 %v819
    %v923 = vunpack.c.h.b16 %v819
    %v924 = vunpack.c.l.b16 %v820
    %v925 = vunpack.c.h.b16 %v820
    %v926 = vunpack.c.l.b16 %v821
    %v927 = vunpack.c.h.b16 %v821
    %v928 = vunpack.c.l.b16 %v822
    %v929 = vunpack.c.h.b16 %v822
    %v930 = vunpack.c.l.b16 %v823
    %v931 = vunpack.c.h.b16 %v823
    %v932 = vpack.c.b16 %v870, %v868
    %v933 = vpack.c.b16 %v871, %v869
    %v934 = vpack.c.b16 %v874, %v872
    %v935 = vpack.c.b16 %v875, %v873
    %v936 = vpack.c.b16 %v878, %v876
    %v937 = vpack.c.b16 %v879, %v877
    %v938 = vpack.c.b16 %v882, %v880
    %v939 = vpack.c.b16 %v883, %v881
    %v940 = vpack.c.b16 %v886, %v884
    %v941 = vpack.c.b16 %v887, %v885
    %v942 = vpack.c.b16 %v890, %v888
    %v943 = vpack.c.b16 %v891, %v889
    %v944 = vpack.c.b16 %v894, %v892
    %v945 = vpack.c.b16 %v895, %v893
    %v946 = vpack.c.b16 %v898, %v896
    %v947 = vpack.c.b16 %v899, %v897
    %v948 = vpack.c.b16 %v902, %v900
    %v949 = vpack.c.b16 %v903, %v901
    %v950 = vpack.c.b16 %v906, %v904
    %v951 = vpack.c.b16 %v907, %v905
    %v952 = vpack.c.b16 %v910, %v908
    %v953 = vpack.c.b16 %v911, %v909
    %v954 = vpack.c.b16 %v914, %v912
    %v955 = vpack.c.b16 %v915, %v913
    %v956 = vpack.c.b16 %v918, %v916
    %v957 = vpack.c.b16 %v919, %v917
    %v958 = vpack.c.b16 %v922, %v920
    %v959 = vpack.c.b16 %v923, %v921
    %v960 = vpack.c.b16 %v926, %v924
    %v961 = vpack.c.b16 %v927, %v925
    %v962 = vpack.c.b16 %v930, %v928
    %v963 = vpack.c.b16 %v931, %v929
    %996 = vmatprep.subr.bf16.mxu0 %v933
    %997 = vmatpush1.bf16.msra.mxu0 %v932
    %998 = vmatprep.subr.bf16.mxu0 %v935
    %999 = vmatpush1.bf16.msra.mxu0 %v934
    %1000 = vmatprep.subr.bf16.mxu0 %v937
    %1001 = vmatpush1.bf16.msra.mxu0 %v936
    %1002 = vmatprep.subr.bf16.mxu0 %v939
    %1003 = vmatpush1.bf16.msra.mxu0 %v938
    %1004 = vmatprep.subr.bf16.mxu0 %v941
    %1005 = vmatpush1.bf16.msra.mxu0 %v940
    %1006 = vmatprep.subr.bf16.mxu0 %v943
    %1007 = vmatpush1.bf16.msra.mxu0 %v942
    %1008 = vmatprep.subr.bf16.mxu0 %v945
    %1009 = vmatpush1.bf16.msra.mxu0 %v944
    %1010 = vmatprep.subr.bf16.mxu0 %v947
    %1011 = vmatpush1.bf16.msra.mxu0 %v946
    %1012 = vmatprep.subr.bf16.mxu0 %v949
    %1013 = vmatpush1.bf16.msra.mxu0 %v948
    %1014 = vmatprep.subr.bf16.mxu0 %v951
    %1015 = vmatpush1.bf16.msra.mxu0 %v950
    %1016 = vmatprep.subr.bf16.mxu0 %v953
    %1017 = vmatpush1.bf16.msra.mxu0 %v952
    %1018 = vmatprep.subr.bf16.mxu0 %v955
    %1019 = vmatpush1.bf16.msra.mxu0 %v954
    %1020 = vmatprep.subr.bf16.mxu0 %v957
    %1021 = vmatpush1.bf16.msra.mxu0 %v956
    %1022 = vmatprep.subr.bf16.mxu0 %v959
    %1023 = vmatpush1.bf16.msra.mxu0 %v958
    %1024 = vmatprep.subr.bf16.mxu0 %v961
    %1025 = vmatpush1.bf16.msra.mxu0 %v960
    %1026 = vmatprep.subr.bf16.mxu0 %v963
    %1027 = vmatpush1.bf16.msra.mxu0 %v962
    %1028 = vmatprep.mubr.bf16.mxu0 %v299
    %1029 = vmatmul.mubr.bf16.gmra.mrb[0].mxu0 %v298
    %v1030 = vpop.f32.mrb[0].mxu0
    %v1031 = vadd.f32 %v829, %v1030
    %v1032 = vpop.f32.mrb[0].mxu0
    %v1033 = vadd.f32 %v833, %v1032
    %v1034 = vpop.f32.mrb[0].mxu0
    %v1035 = vadd.f32 %v829, %v1034
    %v1036 = vpop.f32.mrb[0].mxu0
    %v1037 = vadd.f32 %v833, %v1036
    %1038 = vdwg.mxu0
    %v1039 = vmax.f32 %v1031, 0.0
    %v1040 = vmax.f32 %v1033, 0.0
    %v1041 = vmax.f32 %v1035, 0.0
    %v1042 = vmax.f32 %v1037, 0.0
    %v1043 = vpack.c.bf16 %v1041, %v1039
    %v1044 = vpack.c.bf16 %v1042, %v1040
    %v1045 = vld [vmem:[#allocation11] sm:$0xf]
    %v1046 = vld [vmem:[#allocation11 + $0x4] sm:$0xf]
    %v1047 = vld [vmem:[#allocation11 + $0x8] sm:$0xf]
    %v1048 = vld [vmem:[#allocation11 + $0xc] sm:$0xf]
    %v1049 = vld [vmem:[#allocation11 + $0x10] sm:$0xf]
    %v1050 = vld [vmem:[#allocation11 + $0x14] sm:$0xf]
    %v1051 = vld [vmem:[#allocation11 + $0x18] sm:$0xf]
    %v1052 = vld [vmem:[#allocation11 + $0x1c] sm:$0xf]
    %v1053 = vld [vmem:[#allocation11 + $0x20] sm:$0xf]
    %v1054 = vld [vmem:[#allocation11 + $0x24] sm:$0xf]
    %v1055 = vld [vmem:[#allocation11 + $0x28] sm:$0xf]
    %v1056 = vld [vmem:[#allocation11 + $0x2c] sm:$0xf]
    %v1057 = vld [vmem:[#allocation11 + $0x30] sm:$0xf]
    %v1058 = vld [vmem:[#allocation11 + $0x34] sm:$0xf]
    %v1059 = vld [vmem:[#allocation11 + $0x38] sm:$0xf]
    %v1060 = vld [vmem:[#allocation11 + $0x3c] sm:$0xf]
    %v1061 = vld [vmem:[#allocation11 + $0x40] sm:$0xf]
    %v1062 = vld [vmem:[#allocation11 + $0x44] sm:$0xf]
    %v1063 = vld [vmem:[#allocation11 + $0x48] sm:$0xf]
    %v1064 = vld [vmem:[#allocation11 + $0x4c] sm:$0xf]
    %v1065 = vld [vmem:[#allocation11 + $0x50] sm:$0xf]
    %v1066 = vld [vmem:[#allocation11 + $0x54] sm:$0xf]
    %v1067 = vld [vmem:[#allocation11 + $0x58] sm:$0xf]
    %v1068 = vld [vmem:[#allocation11 + $0x5c] sm:$0xf]
    %v1069 = vld [vmem:[#allocation11 + $0x60] sm:$0xf]
    %v1070 = vld [vmem:[#allocation11 + $0x64] sm:$0xf]
    %v1071 = vld [vmem:[#allocation11 + $0x68] sm:$0xf]
    %v1072 = vld [vmem:[#allocation11 + $0x6c] sm:$0xf]
    %v1073 = vld [vmem:[#allocation11 + $0x70] sm:$0xf]
    %v1074 = vld [vmem:[#allocation11 + $0x74] sm:$0xf]
    %v1075 = vld [vmem:[#allocation11 + $0x78] sm:$0xf]
    %v1076 = vld [vmem:[#allocation11 + $0x7c] sm:$0xf]
    %v1077 = vld [vmem:[%s10] sm:$0x1]
    %v1079 = vlaneseq
    %v1080 = vshrl.u32 %v1079, 7
    %v1081 = vsub.s32 0, %v1080
    %v1082 = vrot.slane %v1077, %v1081
    %v1116 = vunpack.c.l.b16 %v1045
    %v1117 = vunpack.c.l.b16 %v1046
    %v1118 = vunpack.c.l.b16 %v1047
    %v1119 = vunpack.c.l.b16 %v1048
    %v1120 = vunpack.c.l.b16 %v1049
    %v1121 = vunpack.c.l.b16 %v1050
    %v1122 = vunpack.c.l.b16 %v1051
    %v1123 = vunpack.c.l.b16 %v1052
    %v1124 = vunpack.c.l.b16 %v1053
    %v1125 = vunpack.c.l.b16 %v1054
    %v1126 = vunpack.c.l.b16 %v1055
    %v1127 = vunpack.c.l.b16 %v1056
    %v1128 = vunpack.c.l.b16 %v1057
    %v1129 = vunpack.c.l.b16 %v1058
    %v1130 = vunpack.c.l.b16 %v1059
    %v1131 = vunpack.c.l.b16 %v1060
    %v1132 = vunpack.c.l.b16 %v1061
    %v1133 = vunpack.c.l.b16 %v1062
    %v1134 = vunpack.c.l.b16 %v1063
    %v1135 = vunpack.c.l.b16 %v1064
    %v1136 = vunpack.c.l.b16 %v1065
    %v1137 = vunpack.c.l.b16 %v1066
    %v1138 = vunpack.c.l.b16 %v1067
    %v1139 = vunpack.c.l.b16 %v1068
    %v1140 = vunpack.c.l.b16 %v1069
    %v1141 = vunpack.c.l.b16 %v1070
    %v1142 = vunpack.c.l.b16 %v1071
    %v1143 = vunpack.c.l.b16 %v1072
    %v1144 = vunpack.c.l.b16 %v1073
    %v1145 = vunpack.c.l.b16 %v1074
    %v1146 = vunpack.c.l.b16 %v1075
    %v1147 = vunpack.c.l.b16 %v1076
    %v1148 = vpack.c.b16 %v1117, %v1116
    %v1149 = vpack.c.b16 %v1119, %v1118
    %v1150 = vpack.c.b16 %v1121, %v1120
    %v1151 = vpack.c.b16 %v1123, %v1122
    %v1152 = vpack.c.b16 %v1125, %v1124
    %v1153 = vpack.c.b16 %v1127, %v1126
    %v1154 = vpack.c.b16 %v1129, %v1128
    %v1155 = vpack.c.b16 %v1131, %v1130
    %v1156 = vpack.c.b16 %v1133, %v1132
    %v1157 = vpack.c.b16 %v1135, %v1134
    %v1158 = vpack.c.b16 %v1137, %v1136
    %v1159 = vpack.c.b16 %v1139, %v1138
    %v1160 = vpack.c.b16 %v1141, %v1140
    %v1161 = vpack.c.b16 %v1143, %v1142
    %v1162 = vpack.c.b16 %v1145, %v1144
    %v1163 = vpack.c.b16 %v1147, %v1146
    %1180 = vmatprep.subr.bf16.mxu0 0
    %1181 = vmatpush1.bf16.msra.mxu0 %v1148
    %1182 = vmatprep.subr.bf16.mxu0 0
    %1183 = vmatpush1.bf16.msra.mxu0 %v1149
    %1184 = vmatprep.subr.bf16.mxu0 0
    %1185 = vmatpush1.bf16.msra.mxu0 %v1150
    %1186 = vmatprep.subr.bf16.mxu0 0
    %1187 = vmatpush1.bf16.msra.mxu0 %v1151
    %1188 = vmatprep.subr.bf16.mxu0 0
    %1189 = vmatpush1.bf16.msra.mxu0 %v1152
    %1190 = vmatprep.subr.bf16.mxu0 0
    %1191 = vmatpush1.bf16.msra.mxu0 %v1153
    %1192 = vmatprep.subr.bf16.mxu0 0
    %1193 = vmatpush1.bf16.msra.mxu0 %v1154
    %1194 = vmatprep.subr.bf16.mxu0 0
    %1195 = vmatpush1.bf16.msra.mxu0 %v1155
    %1196 = vmatprep.subr.bf16.mxu0 0
    %1197 = vmatpush1.bf16.msra.mxu0 %v1156
    %1198 = vmatprep.subr.bf16.mxu0 0
    %1199 = vmatpush1.bf16.msra.mxu0 %v1157
    %1200 = vmatprep.subr.bf16.mxu0 0
    %1201 = vmatpush1.bf16.msra.mxu0 %v1158
    %1202 = vmatprep.subr.bf16.mxu0 0
    %1203 = vmatpush1.bf16.msra.mxu0 %v1159
    %1204 = vmatprep.subr.bf16.mxu0 0
    %1205 = vmatpush1.bf16.msra.mxu0 %v1160
    %1206 = vmatprep.subr.bf16.mxu0 0
    %1207 = vmatpush1.bf16.msra.mxu0 %v1161
    %1208 = vmatprep.subr.bf16.mxu0 0
    %1209 = vmatpush1.bf16.msra.mxu0 %v1162
    %1210 = vmatprep.subr.bf16.mxu0 0
    %1211 = vmatpush1.bf16.msra.mxu0 %v1163
    %1212 = vmatprep.mubr.bf16.mxu0 %v1044
    %1213 = vmatmul.mubr.bf16.gmra.mrb[0].mxu0 %v1043
    %v1214 = vpop.f32.mrb[0].mxu0
    %v1215 = vadd.f32 %v1082, %v1214
    %v1216 = vpop.f32.mrb[0].mxu0
    %v1217 = vpop.f32.mrb[0].mxu0
    %v1218 = vadd.f32 %v1082, %v1217
    %v1219 = vpop.f32.mrb[0].mxu0
    %1220 = vdwg.mxu0
    %v1221 = vtanh.pop %v1215
    %v1222 = vtanh.pop %v1218
    %1223 = vst [vmem:[#allocation14] sm:$0xff] %v1221
    %1224 = vst [vmem:[#allocation14 + $0x8] sm:$0xff] %v1222
    // Predicated region
    $region70: #{tpu_custom_call.1} parent=1 // pred_check
      _
    $region71: #{tpu_custom_call.1} parent=1 // pred_check_branch
      %1226 = sbr.rel (0) target = $region73
    $region72: #{tpu_custom_call.1} parent=1 // pred_region
      %s1228 = ssub.s32 128, 128
      %1229 = vsyncadd [#allocation4], %s1228
      %s1231 = sshll.u32 [#allocation13], 4
      %s1232 = int_to_ptr.vmem [resolvable:$true] %s1231
      %1234 = dma.vmem_to_hbm [thread:$0]  %s1232, 128, %s11, [#allocation4]
    $region73: #{tpu_custom_call.1} parent=1 // pred_fallthru
      _
    // Predicated region
    $region74: #{tpu_custom_call.1} parent=1 // pred_check
      _
    $region75: #{tpu_custom_call.1} parent=1 // pred_check_branch
      %1236 = sbr.rel (0) target = $region77
    $region76: #{tpu_custom_call.1} parent=1 // pred_region
      %s1238 = ssub.s32 256, 256
      %1239 = vsyncadd [#allocation15], %s1238
      %s1240 = sshll.u32 [#allocation14], 4
      %s1241 = int_to_ptr.vmem [resolvable:$true] %s1240
      %1246 = dma.vmem_to_hbm [thread:$0]  %s1241, 256, %s12, [#allocation15], 128, 128, 8
    $region77: #{tpu_custom_call.1} parent=1 // pred_fallthru
      _
    // Predicated region
    $region78: #{tpu_custom_call.1} parent=1 // pred_check
      _
    $region79: #{tpu_custom_call.1} parent=1 // pred_check_branch
      %1248 = sbr.rel (0) target = $region81
    $region80: #{tpu_custom_call.1} parent=1 // pred_region
      %1249 = dma.done [#allocation4], 128
    $region81: #{tpu_custom_call.1} parent=1 // pred_fallthru
      _
    // Predicated region
    $region82: #{tpu_custom_call.1} parent=1 // pred_check
      _
    $region83: #{tpu_custom_call.1} parent=1 // pred_check_branch
      %1251 = sbr.rel (0) target = $region85
    $region84: #{tpu_custom_call.1} parent=1 // pred_region
      %1252 = dma.done [#allocation15], 256
    $region85: #{tpu_custom_call.1} parent=1 // pred_fallthru
      _
    %1253 = vsyncpa [#allocation3], 1
    %1254 = vsyncpa [#allocation6], 1
    %1255 = vsyncpa [#allocation9], 1
    %1256 = vsyncpa [#allocation12], 1
    %1257 = vsyncpa [#allocation4], 1
    %1258 = vsyncpa [#allocation15], 1

</llo_original>
